<compile_context>
chip_gen: v7x
topology: tpu7x:2x2x1
jax: 0.10.0
libtpu: 0.0.40
codegen_flags: <defaults>
</compile_context>

<pallas_src>
import math

import jax
import jax.numpy as jnp
from jax.experimental import pallas as pl
from jax.experimental.pallas import tpu as pltpu


def _spa_attn_kernel(x_ref, xg_ref, bias_ref, wqk_ref, wvo_ref, o_ref, qx_ref):
    """One (batch, N-tile, sample) grid step.

    x_ref    : (C, TN)      f32   input pixels, channels on sublane, pixels on lane
    xg_ref   : (K, C, TN)   bf16  gathered neighbour features
    bias_ref : (K, TN)      bf16  additive mask bias (0 or -1e30)
    wqk_ref  : (C, C)       f32   folded  scale * (wq @ wk.T), transposed
    wvo_ref  : (C, C)       f32   folded  (wv @ wo) / nsamples, transposed
    o_ref    : (C, TN)      f32   accumulated output (resident across samples)
    qx_ref   : (C, TN)      f32   VMEM scratch holding wqk @ x for this tile
    """
    s = pl.program_id(2)

    @pl.when(s == 0)
    def _():
        o_ref[...] = jnp.zeros_like(o_ref)
        # Query projection computed once per (batch, N-tile); reused for all
        # samples of this tile (sample axis is the innermost, "arbitrary" axis).
        qx_ref[...] = jnp.dot(wqk_ref[...], x_ref[...],
                              preferred_element_type=jnp.float32)

    xg = xg_ref[...].astype(jnp.float32)        # (K, C, TN)
    bias = bias_ref[...].astype(jnp.float32)    # (K, TN)
    qx = qx_ref[...]                            # (C, TN)

    # Attention logits over the K sampled neighbours; scale is folded into wqk
    # and the superpixel mask is a precomputed additive bias.
    logits = jnp.sum(qx[None, :, :] * xg, axis=1) + bias    # (K, TN)

    # Masked softmax over K.  Masked entries carry -1e30, so exp underflows to
    # exactly 0 — no second select needed.  Self is always unmasked, so the
    # denominator can never be zero.
    m_max = jnp.max(logits, axis=0, keepdims=True)          # (1, TN)
    p = jnp.exp(logits - m_max)                             # (K, TN)
    denom = jnp.sum(p, axis=0, keepdims=True)               # (1, TN)
    p = p * pl.reciprocal(denom, approx=True)               # (K, TN)

    # Weighted neighbour sum, then the folded value->output projection.
    ctx = jnp.sum(p[:, None, :] * xg, axis=0)               # (C, TN)
    o_ref[...] += jnp.dot(wvo_ref[...], ctx,
                          preferred_element_type=jnp.float32)


def get_sp_sample(B, N, key, topk, n_superpixels=4):
    """Deterministic synthetic superpixel sampler (stand-in for the injected module)."""
    k1, k2 = jax.random.split(key)
    labels = jax.random.randint(k1, (B, N), 0, n_superpixels, dtype=jnp.int32)
    idx = jax.random.randint(k2, (B, N, topk), 0, N, dtype=jnp.int32)
    self_idx = jnp.broadcast_to(jnp.arange(N, dtype=jnp.int32)[None, :, None],
                                (B, N, 1))
    idx = jnp.concatenate([self_idx, idx[:, :, 1:]], axis=-1)          # (B, N, K)
    lab_at_idx = jax.vmap(lambda l, i: l[i])(labels, idx)              # (B, N, K)
    mask = (lab_at_idx == labels[:, :, None]).astype(jnp.float32)
    mask = mask.at[:, :, 0].set(1.0)                                   # self always kept
    return idx, labels, mask


def spa_sampling_forward(x_nchw, params, nsamples, topk):
    B, C, H, W = x_nchw.shape
    N = H * W

    # NCHW flattens directly into the lane-dense (B, C, N) layout: channels on
    # the sublane axis, pixels on the lane axis.  No transposes needed.
    x_bcn = x_nchw.reshape(B, C, N).astype(jnp.float32)

    scale = 1.0 / math.sqrt(C)
    # Folded weights (transposed for the (C, N) layout):
    #   logits = sum_c (wqk @ x)[c, n] * xg[k, c, n]
    #   out    = wvo @ (sum_k p[k, n] * xg[k, c, n])
    wqk_t = (params["wk"] @ params["wq"].T) * scale          # = (wq @ wk.T).T * scale
    wvo_t = (params["wo"].T @ params["wv"].T) / nsamples     # = (wv @ wo).T / nsamples
    wqk_t = wqk_t.astype(jnp.float32)
    wvo_t = wvo_t.astype(jnp.float32)

    xg_list, bias_list = [], []
    for s in range(nsamples):
        key = jax.random.PRNGKey(1000 + s)
        idx, _labels, mask = get_sp_sample(B, N, key, topk)          # (B,N,K)
        # TODO(synk): data-dependent per-pixel gather stays in plain JAX.
        g = jax.vmap(lambda xc, iv: xc[:, iv])(x_bcn, idx)           # (B, C, N, K)
        g = jnp.transpose(g, (0, 3, 1, 2))                           # (B, K, C, N)
        xg_list.append(g.astype(jnp.bfloat16))
        bias = jnp.where(mask > 0.5, 0.0, -1e30)                     # (B, N, K)
        bias_list.append(jnp.transpose(bias, (0, 2, 1)).astype(jnp.bfloat16))
    xg_all = jnp.stack(xg_list, axis=0)        # (S, B, K, C, N) bf16
    bias_all = jnp.stack(bias_list, axis=0)    # (S, B, K, N)    bf16

    # Lane tile over N: whole-N at small shapes, 1024-wide lane tiles at
    # realistic H*W so the xg block stays comfortably inside VMEM (v7x: 64 MiB
    # physical / 32 MiB scoped) and gives the pipeliner / second TensorCore work.
    tile_n = 1024 if (N > 1024 and N % 1024 == 0) else N
    n_tiles = N // tile_n

    out_bcn = pl.pallas_call(
        _spa_attn_kernel,
        out_shape=jax.ShapeDtypeStruct((B, C, N), jnp.float32),
        grid=(B, n_tiles, nsamples),
        in_specs=[
            pl.BlockSpec((None, C, tile_n), lambda b, t, s: (b, 0, t)),
            pl.BlockSpec((None, None, topk, C, tile_n),
                         lambda b, t, s: (s, b, 0, 0, t)),
            pl.BlockSpec((None, None, topk, tile_n),
                         lambda b, t, s: (s, b, 0, t)),
            pl.BlockSpec((C, C), lambda b, t, s: (0, 0)),
            pl.BlockSpec((C, C), lambda b, t, s: (0, 0)),
        ],
        out_specs=pl.BlockSpec((None, C, tile_n), lambda b, t, s: (b, 0, t)),
        scratch_shapes=[pltpu.VMEM((C, tile_n), jnp.float32)],
        compiler_params=pltpu.CompilerParams(
            dimension_semantics=("parallel", "parallel", "arbitrary"),
            vmem_limit_bytes=32 * 1024 * 1024),
    )(x_bcn, xg_all, bias_all, wqk_t, wvo_t)

    return out_bcn.reshape(B, C, H, W)


def reference_forward(x_nchw, params, nsamples, topk):
    """Pure-JAX reference of the same SpaSampling forward (for validation)."""
    B, C, H, W = x_nchw.shape
    N = H * W
    x_flat = jnp.transpose(x_nchw, (0, 2, 3, 1)).reshape(B, N, C)
    scale = 1.0 / math.sqrt(C)
    out = jnp.zeros((B, N, C), jnp.float32)
    for s in range(nsamples):
        key = jax.random.PRNGKey(1000 + s)
        idx, _labels, mask = get_sp_sample(B, N, key, topk)
        xg = jax.vmap(lambda xv, iv: xv[iv])(x_flat, idx)            # (B, N, K, C)
        q = x_flat @ params["wq"]
        k = jnp.einsum("bnkc,cd->bnkd", xg, params["wk"])
        v = jnp.einsum("bnkc,cd->bnkd", xg, params["wv"])
        logits = jnp.sum(q[:, :, None, :] * k, axis=-1) * scale
        logits = jnp.where(mask > 0.5, logits, -1e30)
        p = jnp.exp(logits - jnp.max(logits, axis=-1, keepdims=True))
        p = jnp.where(mask > 0.5, p, 0.0)
        p = p / jnp.sum(p, axis=-1, keepdims=True)
        ctx = jnp.sum(p[..., None] * v, axis=2)
        out = out + (ctx @ params["wo"]) / nsamples
    return out.reshape(B, H, W, C).transpose(0, 3, 1, 2)


if __name__ == "__main__":
    B, C, H, W = 2, 8, 8, 8
    nsamples, topk = 4, 8

    key = jax.random.PRNGKey(0)
    kx, kq, kk, kv, ko = jax.random.split(key, 5)
    x = jax.random.normal(kx, (B, C, H, W), dtype=jnp.float32)
    params = {
        "wq": 0.2 * jax.random.normal(kq, (C, C), dtype=jnp.float32),
        "wk": 0.2 * jax.random.normal(kk, (C, C), dtype=jnp.float32),
        "wv": 0.2 * jax.random.normal(kv, (C, C), dtype=jnp.float32),
        "wo": 0.2 * jax.random.normal(ko, (C, C), dtype=jnp.float32),
    }

    out = spa_sampling_forward(x, params, nsamples, topk)
    out = jax.block_until_ready(out)

    ref = reference_forward(x, params, nsamples, topk)
    assert out.shape == (B, C, H, W)
    assert jnp.allclose(out, ref, atol=1e-2, rtol=1e-2), "mismatch vs reference"

    print("KERNEL_OK")
</pallas_src>

<mosaic_0001>
module attributes {stable_mosaic.version = 11 : i64} {
  func.func @_spa_attn_kernel(%arg0: i32, %arg1: i32, %arg2: i32, %arg3: memref<1x8x64xf32, #tpu.memory_space<vmem>>, %arg4: memref<1x1x8x8x64xbf16, #tpu.memory_space<vmem>>, %arg5: memref<1x1x8x64xbf16, #tpu.memory_space<vmem>>, %arg6: memref<8x8xf32, #tpu.memory_space<vmem>>, %arg7: memref<8x8xf32, #tpu.memory_space<vmem>>, %arg8: memref<1x8x64xf32, #tpu.memory_space<vmem>>, %arg9: memref<8x64xf32, #tpu.memory_space<vmem>>) attributes {dimension_semantics = [#tpu.dimension_semantics<parallel>, #tpu.dimension_semantics<parallel>, #tpu.dimension_semantics<arbitrary>], iteration_bounds = array<i64: 2, 1, 4>, scalar_prefetch = 0 : i64, scratch_operands = 1 : i64, tpu.core_type = #tpu.core_type<tc>, window_params = [{transform_indices = @transform_0, window_bounds = array<i64: 1, 8, 64>}, {transform_indices = @transform_1, window_bounds = array<i64: 1, 1, 8, 8, 64>}, {transform_indices = @transform_2, window_bounds = array<i64: 1, 1, 8, 64>}, {pipeline_mode = #tpu.pipeline_mode<synchronous>, transform_indices = @transform_3, window_bounds = array<i64: 8, 8>}, {pipeline_mode = #tpu.pipeline_mode<synchronous>, transform_indices = @transform_4, window_bounds = array<i64: 8, 8>}, {transform_indices = @transform_5, window_bounds = array<i64: 1, 8, 64>}]} {
    %c0_i32 = arith.constant 0 : i32
    %0 = arith.cmpi eq, %arg2, %c0_i32 : i32
    %1 = arith.extui %0 : i1 to i32
    %c0_i32_0 = arith.constant 0 : i32
    %2 = arith.cmpi ne, %1, %c0_i32_0 : i32
    scf.if %2 {
      %cst_23 = arith.constant 0.000000e+00 : f32
      %37 = vector.broadcast %cst_23 : f32 to vector<8x64xf32>
      %c0_24 = arith.constant 0 : index
      %c0_25 = arith.constant 0 : index
      %c0_26 = arith.constant 0 : index
      %38 = vector.load %arg8[%c0_24, %c0_25, %c0_26] : memref<1x8x64xf32, #tpu.memory_space<vmem>>, vector<1x8x64xf32>
      %39 = vector.shape_cast %38 : vector<1x8x64xf32> to vector<8x64xf32>
      %40 = vector.shape_cast %37 : vector<8x64xf32> to vector<1x8x64xf32>
      tpu.vector_store %arg8[%c0_24, %c0_25, %c0_26], %40 {strides = array<i32>} : memref<1x8x64xf32, #tpu.memory_space<vmem>>, vector<1x8x64xf32>,
      %c0_27 = arith.constant 0 : index
      %c0_28 = arith.constant 0 : index
      %41 = vector.load %arg6[%c0_27, %c0_28] : memref<8x8xf32, #tpu.memory_space<vmem>>, vector<8x8xf32>
      %c0_29 = arith.constant 0 : index
      %c0_30 = arith.constant 0 : index
      %c0_31 = arith.constant 0 : index
      %42 = vector.load %arg3[%c0_29, %c0_30, %c0_31] : memref<1x8x64xf32, #tpu.memory_space<vmem>>, vector<1x8x64xf32>
      %43 = vector.shape_cast %42 : vector<1x8x64xf32> to vector<8x64xf32>
      %cst_32 = arith.constant dense<0.000000e+00> : vector<8x64xf32>
      %44 = tpu.matmul %41, %43, %cst_32 {dimension_numbers = #tpu.dot_dimension_numbers<[1], [0], [0], [1], [0, 0, 1, 1], [], []>} : vector<8x8xf32>, vector<8x64xf32>, vector<8x64xf32> -> vector<8x64xf32>
      %c0_33 = arith.constant 0 : index
      %c0_34 = arith.constant 0 : index
      %45 = vector.load %arg9[%c0_33, %c0_34] : memref<8x64xf32, #tpu.memory_space<vmem>>, vector<8x64xf32>
      tpu.vector_store %arg9[%c0_33, %c0_34], %44 {strides = array<i32>} : memref<8x64xf32, #tpu.memory_space<vmem>>, vector<8x64xf32>,
    } else {
    }
    %c0 = arith.constant 0 : index
    %c0_1 = arith.constant 0 : index
    %c0_2 = arith.constant 0 : index
    %c0_3 = arith.constant 0 : index
    %c0_4 = arith.constant 0 : index
    %3 = vector.load %arg4[%c0, %c0_1, %c0_2, %c0_3, %c0_4] : memref<1x1x8x8x64xbf16, #tpu.memory_space<vmem>>, vector<1x1x8x8x64xbf16>
    %4 = vector.shape_cast %3 : vector<1x1x8x8x64xbf16> to vector<8x8x64xbf16>
    %5 = arith.extf %4 : vector<8x8x64xbf16> to vector<8x8x64xf32>
    %c0_5 = arith.constant 0 : index
    %c0_6 = arith.constant 0 : index
    %c0_7 = arith.constant 0 : index
    %c0_8 = arith.constant 0 : index
    %6 = vector.load %arg5[%c0_5, %c0_6, %c0_7, %c0_8] : memref<1x1x8x64xbf16, #tpu.memory_space<vmem>>, vector<1x1x8x64xbf16>
    %7 = vector.shape_cast %6 : vector<1x1x8x64xbf16> to vector<8x64xbf16>
    %8 = arith.extf %7 : vector<8x64xbf16> to vector<8x64xf32>
    %c0_9 = arith.constant 0 : index
    %c0_10 = arith.constant 0 : index
    %9 = vector.load %arg9[%c0_9, %c0_10] : memref<8x64xf32, #tpu.memory_space<vmem>>, vector<8x64xf32>
    %10 = vector.shape_cast %9 : vector<8x64xf32> to vector<1x8x64xf32>
    %11 = vector.broadcast %10 : vector<1x8x64xf32> to vector<8x8x64xf32>
    %12 = arith.mulf %11, %5 : vector<8x8x64xf32>
    %cst = arith.constant dense<0.000000e+00> : vector<8x64xf32>
    %13 = vector.multi_reduction <add>, %12, %cst [1] : vector<8x8x64xf32> to vector<8x64xf32>
    %14 = arith.addf %13, %8 : vector<8x64xf32>
    %cst_11 = arith.constant dense<0xFF800000> : vector<64xf32>
    %15 = vector.multi_reduction <maximumf>, %14, %cst_11 [0] : vector<8x64xf32> to vector<64xf32>
    %16 = vector.shape_cast %15 : vector<64xf32> to vector<1x64xf32>
    %17 = vector.broadcast %16 : vector<1x64xf32> to vector<8x64xf32>
    %18 = arith.subf %14, %17 : vector<8x64xf32>
    %19 = math.exp %18 : vector<8x64xf32>
    %cst_12 = arith.constant dense<0.000000e+00> : vector<64xf32>
    %20 = vector.multi_reduction <add>, %19, %cst_12 [0] : vector<8x64xf32> to vector<64xf32>
    %21 = vector.shape_cast %20 : vector<64xf32> to vector<1x64xf32>
    %22 = tpu.reciprocal %21 {approx = true} : vector<1x64xf32> -> vector<1x64xf32>
    %23 = vector.broadcast %22 : vector<1x64xf32> to vector<8x64xf32>
    %24 = arith.mulf %19, %23 : vector<8x64xf32>
    %25 = vector.shape_cast %24 : vector<8x64xf32> to vector<8x1x64xf32>
    %26 = vector.broadcast %25 : vector<8x1x64xf32> to vector<8x8x64xf32>
    %27 = arith.mulf %26, %5 : vector<8x8x64xf32>
    %cst_13 = arith.constant dense<0.000000e+00> : vector<8x64xf32>
    %28 = vector.multi_reduction <add>, %27, %cst_13 [0] : vector<8x8x64xf32> to vector<8x64xf32>
    %c0_14 = arith.constant 0 : index
    %c0_15 = arith.constant 0 : index
    %c0_16 = arith.constant 0 : index
    %29 = vector.load %arg8[%c0_14, %c0_15, %c0_16] : memref<1x8x64xf32, #tpu.memory_space<vmem>>, vector<1x8x64xf32>
    %30 = vector.shape_cast %29 : vector<1x8x64xf32> to vector<8x64xf32>
    %c0_17 = arith.constant 0 : index
    %c0_18 = arith.constant 0 : index
    %31 = vector.load %arg7[%c0_17, %c0_18] : memref<8x8xf32, #tpu.memory_space<vmem>>, vector<8x8xf32>
    %cst_19 = arith.constant dense<0.000000e+00> : vector<8x64xf32>
    %32 = tpu.matmul %31, %28, %cst_19 {dimension_numbers = #tpu.dot_dimension_numbers<[1], [0], [0], [1], [0, 0, 1, 1], [], []>} : vector<8x8xf32>, vector<8x64xf32>, vector<8x64xf32> -> vector<8x64xf32>
    %33 = arith.addf %30, %32 : vector<8x64xf32>
    %c0_20 = arith.constant 0 : index
    %c0_21 = arith.constant 0 : index
    %c0_22 = arith.constant 0 : index
    %34 = vector.load %arg8[%c0_20, %c0_21, %c0_22] : memref<1x8x64xf32, #tpu.memory_space<vmem>>, vector<1x8x64xf32>
    %35 = vector.shape_cast %34 : vector<1x8x64xf32> to vector<8x64xf32>
    %36 = vector.shape_cast %33 : vector<8x64xf32> to vector<1x8x64xf32>
    tpu.vector_store %arg8[%c0_20, %c0_21, %c0_22], %36 {strides = array<i32>} : memref<1x8x64xf32, #tpu.memory_space<vmem>>, vector<1x8x64xf32>,
    return
  }
  func.func @transform_0(%arg0: i32, %arg1: i32, %arg2: i32) -> (i32, i32, i32) {
    %c0_i32 = arith.constant 0 : i32
    %c0_i32_0 = arith.constant 0 : i32
    return %arg0, %c0_i32, %arg1 : i32, i32, i32
  }
  func.func @transform_1(%arg0: i32, %arg1: i32, %arg2: i32) -> (i32, i32, i32, i32, i32) {
    %c0_i32 = arith.constant 0 : i32
    %c0_i32_0 = arith.constant 0 : i32
    %c0_i32_1 = arith.constant 0 : i32
    return %arg2, %arg0, %c0_i32, %c0_i32_0, %arg1 : i32, i32, i32, i32, i32
  }
  func.func @transform_2(%arg0: i32, %arg1: i32, %arg2: i32) -> (i32, i32, i32, i32) {
    %c0_i32 = arith.constant 0 : i32
    %c0_i32_0 = arith.constant 0 : i32
    return %arg2, %arg0, %c0_i32, %arg1 : i32, i32, i32, i32
  }
  func.func @transform_3(%arg0: i32, %arg1: i32, %arg2: i32) -> (i32, i32) {
    %c0_i32 = arith.constant 0 : i32
    %c0_i32_0 = arith.constant 0 : i32
    %c0_i32_1 = arith.constant 0 : i32
    return %c0_i32, %c0_i32_0 : i32, i32
  }
  func.func @transform_4(%arg0: i32, %arg1: i32, %arg2: i32) -> (i32, i32) {
    %c0_i32 = arith.constant 0 : i32
    %c0_i32_0 = arith.constant 0 : i32
    %c0_i32_1 = arith.constant 0 : i32
    return %c0_i32, %c0_i32_0 : i32, i32
  }
  func.func @transform_5(%arg0: i32, %arg1: i32, %arg2: i32) -> (i32, i32, i32) {
    %c0_i32 = arith.constant 0 : i32
    %c0_i32_0 = arith.constant 0 : i32
    return %arg0, %c0_i32, %arg1 : i32, i32, i32
  }
}

</mosaic_0001>

<llo_original>
// kernel: tpu_custom_call.1
$region0: #{tpu_custom_call.1}
  #allocation0 [shape = 'u32[]', space=smem, size = 0x4, offset = 0x4, fixed_abs, tag = 'smem constant byte address 0x4 - core index']
  #allocation1 [shape = 'u32[144,128]{1,0:T(1,128)}', space=vmem, size = 0x12000, scoped, tag = 'internal scratch']
  #allocation2 [shape = 'f32[8,64]{1,0:T(8,128)}', space=vmem, size = 0x1000, scoped, tag = 'scratch operand']
  %s0 = inlined_call_operand.hbm [shape: f32[2,8,64], index: 0, kind: input, shape index: {}]
  %s1 = inlined_call_operand.hbm [shape: bf16[4,2,8,8,64], index: 1, kind: input, shape index: {}]
  %s2 = inlined_call_operand.hbm [shape: bf16[4,2,8,64], index: 2, kind: input, shape index: {}]
  %s3 = inlined_call_operand.vmem [shape: f32[8,8], index: 3, kind: input, shape index: {}]
  %s4 = inlined_call_operand.hbm [shape: f32[8,8], index: 4, kind: input, shape index: {}]
  %s5 = inlined_call_operand.hbm [shape: f32[2,8,64], index: 5, kind: output, shape index: {}]
  %s6 = sld [smem:[#allocation0]]
  $region73: #{tpu_custom_call.1} parent=0
    _
  %s8 = ssub.s32 1, %s6
  %s9 = scalar_select 0, %s8, %s6
  $region1: #{tpu_custom_call.1} parent=0
    #allocation3 [shape = 'u8[8192]{0}', space=vmem, size = 0x2000, scoped, tag = 'input window, operand 0']
    #allocation4 [shape = 's32[2]{0}', space=sflag, size = 0x8, scoped, tag = 'scoped memory for tpu_custom_call.1']
    #allocation5 [shape = 's32[2]{0}', space=sflag, size = 0x8, scoped, tag = 'scoped memory for tpu_custom_call.1']
    #allocation6 [shape = 'u8[32768]{0}', space=vmem, size = 0x8000, scoped, tag = 'input window, operand 1']
    #allocation7 [shape = 's32[2]{0}', space=sflag, size = 0x8, scoped, tag = 'scoped memory for tpu_custom_call.1']
    #allocation8 [shape = 'u8[4096]{0}', space=vmem, size = 0x1000, scoped, tag = 'input window, operand 2']
    #allocation9 [shape = 'u8[4096]{0}', space=vmem, size = 0x1000, scoped, tag = 'input window, operand 4, single buffered']
    #allocation10 [shape = 's32[1]{0}', space=sflag, size = 0x4, scoped, tag = 'scoped memory for tpu_custom_call.1']
    #allocation11 [shape = 'u8[8192]{0}', space=vmem, size = 0x2000, scoped, tag = 'output window, operand 0']
    %10 = vsyncpa [#allocation4], 0
    %s11 = scalar_lea.sflag [#allocation4], 1
    %12 = vsyncpa %s11, 0
    %13 = vsyncpa [#allocation7], 0
    %s14 = scalar_lea.sflag [#allocation7], 1
    %15 = vsyncpa %s14, 0
    %16 = vsyncpa [#allocation10], 0
    %17 = vsyncpa [#allocation5], 0
    %s18 = scalar_lea.sflag [#allocation5], 1
    %19 = vsyncpa %s18, 0
    loop: start=0, step=1, limit=10
    $region2: #{tpu_custom_call.1} parent=1 // loop_pre_header
      _
    $region3: #{tpu_custom_call.1} parent=1 // loop_header
      %s21 = sphi 0, %s25
      %p22 = scmp.ge.s32.totalorder %s21, 10
      %s28 = sphi 0, %s47
      %s29 = sphi 0, %s43
      %s30 = sphi 0, %s39
      %s31 = sphi 0, %s28
      %s32 = sphi 0, %s29
      %s33 = sphi 0, %s30
      %s34 = sphi 0, %s31
      %s35 = sphi 0, %s32
      %s36 = sphi 0, %s33
      %s52 = sphi 0, %s54
      %s55 = sphi 0, %s52
      %s56 = sphi 0, %s55
      %s72 = sphi 0, %s56
      %s82 = sphi 0, %s84
      %s85 = sphi 0, %s82
      %s86 = sphi 0, %s85
      %s102 = sphi 0, %s86
      %s112 = sphi 0, %s114
      %s115 = sphi 0, %s112
      %s116 = sphi 0, %s115
      %s132 = sphi 0, %s116
      %s136 = sphi 0, %s136
      %s138 = sphi 0, %s136
      %s139 = sphi 0, %s138
      %s153 = sphi 0, %s139
      %s157 = sphi 0, %s157
      %s159 = sphi 0, %s157
      %s160 = sphi 0, %s159
      %s174 = sphi 0, %s160
      %s182 = sphi 0, %s184
      %s185 = sphi 0, %s182
      %s186 = sphi 0, %s185
      %s202 = sphi 0, %s186
    $region4: #{tpu_custom_call.1} parent=1 // loop_header_branch
      %24 = sbr.rel (%p22) target = $region8
    $region5: #{tpu_custom_call.1} parent=1 // loop_body
      %s26 = ssub.s32 %s21, 1
      %s27 = ssub.s32 %s21, 2
      %s37 = sadd.s32 1, %s30
      %p38 = scmp.ge.s32.totalorder %s37, 4
      %s39 = scalar_select %p38, 0, %s37
      %s40 = sadd.s32 1, %s29
      %s41 = scalar_select %p38, %s40, %s29
      %p42 = scmp.ge.s32.totalorder %s41, 1
      %s43 = scalar_select %p42, 0, %s41
      %s44 = sadd.s32 1, %s28
      %s45 = scalar_select %p42, %s44, %s28
      %p46 = scmp.ge.s32.totalorder %s45, 2
      %s47 = scalar_select %p46, 0, %s45
      %s48 = ssub.s32 %s28, %s47
      %s49 = ssub.s32 %s29, %s43
      %s50 = sor.u32 %s48, %s49
      %p51 = scmp.eq.s32.totalorder %s50, 0
      %s53 = sadd.s32 %s52, 1
      %s54 = scalar_select %p51, %s52, %s53
      %p57 = pneg %p51
      %p58 = scmp.eq.s32.totalorder %s21, 7
      %p59 = por %p57, %p58
      %p60 = scmp.ne.s32.totalorder %s52, %s55
      %p61 = scmp.eq.s32.totalorder %s21, 0
      %p62 = por %p60, %p61
      %p63 = scmp.ne.s32.totalorder %s52, %s55
      %p64 = scmp.eq.s32.totalorder %s26, 7
      %p65 = por %p63, %p64
      %p66 = scmp.ne.s32.totalorder %s55, %s56
      %p67 = scmp.eq.s32.totalorder %s26, 0
      %p68 = por %p66, %p67
      %p69 = scmp.ne.s32.totalorder %s55, %s56
      %p70 = scmp.eq.s32.totalorder %s27, 7
      %p71 = por %p69, %p70
      %p73 = scmp.ne.s32.totalorder %s56, %s72
      %p74 = scmp.eq.s32.totalorder %s27, 0
      %p75 = por %p73, %p74
      %s76 = ssub.s32 %s30, %s39
      %s77 = ssub.s32 %s28, %s47
      %s78 = sor.u32 %s76, %s77
      %s79 = ssub.s32 %s29, %s43
      %s80 = sor.u32 %s78, %s79
      %p81 = scmp.eq.s32.totalorder %s80, 0
      %s83 = sadd.s32 %s82, 1
      %s84 = scalar_select %p81, %s82, %s83
      %p87 = pneg %p81
      %p88 = scmp.eq.s32.totalorder %s21, 7
      %p89 = por %p87, %p88
      %p90 = scmp.ne.s32.totalorder %s82, %s85
      %p91 = scmp.eq.s32.totalorder %s21, 0
      %p92 = por %p90, %p91
      %p93 = scmp.ne.s32.totalorder %s82, %s85
      %p94 = scmp.eq.s32.totalorder %s26, 7
      %p95 = por %p93, %p94
      %p96 = scmp.ne.s32.totalorder %s85, %s86
      %p97 = scmp.eq.s32.totalorder %s26, 0
      %p98 = por %p96, %p97
      %p99 = scmp.ne.s32.totalorder %s85, %s86
      %p100 = scmp.eq.s32.totalorder %s27, 7
      %p101 = por %p99, %p100
      %p103 = scmp.ne.s32.totalorder %s86, %s102
      %p104 = scmp.eq.s32.totalorder %s27, 0
      %p105 = por %p103, %p104
      %s106 = ssub.s32 %s30, %s39
      %s107 = ssub.s32 %s28, %s47
      %s108 = sor.u32 %s106, %s107
      %s109 = ssub.s32 %s29, %s43
      %s110 = sor.u32 %s108, %s109
      %p111 = scmp.eq.s32.totalorder %s110, 0
      %s113 = sadd.s32 %s112, 1
      %s114 = scalar_select %p111, %s112, %s113
      %p117 = pneg %p111
      %p118 = scmp.eq.s32.totalorder %s21, 7
      %p119 = por %p117, %p118
      %p120 = scmp.ne.s32.totalorder %s112, %s115
      %p121 = scmp.eq.s32.totalorder %s21, 0
      %p122 = por %p120, %p121
      %p123 = scmp.ne.s32.totalorder %s112, %s115
      %p124 = scmp.eq.s32.totalorder %s26, 7
      %p125 = por %p123, %p124
      %p126 = scmp.ne.s32.totalorder %s115, %s116
      %p127 = scmp.eq.s32.totalorder %s26, 0
      %p128 = por %p126, %p127
      %p129 = scmp.ne.s32.totalorder %s115, %s116
      %p130 = scmp.eq.s32.totalorder %s27, 7
      %p131 = por %p129, %p130
      %p133 = scmp.ne.s32.totalorder %s116, %s132
      %p134 = scmp.eq.s32.totalorder %s27, 0
      %p135 = por %p133, %p134
      %s137 = sadd.s32 %s136, 1
      %p140 = scmp.eq.s32.totalorder %s21, 7
      %p141 = scmp.ne.s32.totalorder %s136, %s138
      %p142 = scmp.eq.s32.totalorder %s21, 0
      %p143 = por %p141, %p142
      %p144 = scmp.ne.s32.totalorder %s136, %s138
      %p145 = scmp.eq.s32.totalorder %s26, 7
      %p146 = por %p144, %p145
      %p147 = scmp.ne.s32.totalorder %s138, %s139
      %p148 = scmp.eq.s32.totalorder %s26, 0
      %p149 = por %p147, %p148
      %p150 = scmp.ne.s32.totalorder %s138, %s139
      %p151 = scmp.eq.s32.totalorder %s27, 7
      %p152 = por %p150, %p151
      %p154 = scmp.ne.s32.totalorder %s139, %s153
      %p155 = scmp.eq.s32.totalorder %s27, 0
      %p156 = por %p154, %p155
      %s158 = sadd.s32 %s157, 1
      %p161 = scmp.eq.s32.totalorder %s21, 7
      %p162 = scmp.ne.s32.totalorder %s157, %s159
      %p163 = scmp.eq.s32.totalorder %s21, 0
      %p164 = por %p162, %p163
      %p165 = scmp.ne.s32.totalorder %s157, %s159
      %p166 = scmp.eq.s32.totalorder %s26, 7
      %p167 = por %p165, %p166
      %p168 = scmp.ne.s32.totalorder %s159, %s160
      %p169 = scmp.eq.s32.totalorder %s26, 0
      %p170 = por %p168, %p169
      %p171 = scmp.ne.s32.totalorder %s159, %s160
      %p172 = scmp.eq.s32.totalorder %s27, 7
      %p173 = por %p171, %p172
      %p175 = scmp.ne.s32.totalorder %s160, %s174
      %p176 = scmp.eq.s32.totalorder %s27, 0
      %p177 = por %p175, %p176
      %s178 = ssub.s32 %s28, %s47
      %s179 = ssub.s32 %s29, %s43
      %s180 = sor.u32 %s178, %s179
      %p181 = scmp.eq.s32.totalorder %s180, 0
      %s183 = sadd.s32 %s182, 1
      %s184 = scalar_select %p181, %s182, %s183
      %p187 = pneg %p181
      %p188 = scmp.eq.s32.totalorder %s21, 7
      %p189 = por %p187, %p188
      %p190 = scmp.ne.s32.totalorder %s182, %s185
      %p191 = scmp.eq.s32.totalorder %s21, 0
      %p192 = por %p190, %p191
      %p193 = scmp.ne.s32.totalorder %s182, %s185
      %p194 = scmp.eq.s32.totalorder %s26, 7
      %p195 = por %p193, %p194
      %p196 = scmp.ne.s32.totalorder %s185, %s186
      %p197 = scmp.eq.s32.totalorder %s26, 0
      %p198 = por %p196, %p197
      %p199 = scmp.ne.s32.totalorder %s185, %s186
      %p200 = scmp.eq.s32.totalorder %s27, 7
      %p201 = por %p199, %p200
      %p203 = scmp.ne.s32.totalorder %s186, %s202
      %p204 = scmp.eq.s32.totalorder %s27, 0
      %p205 = por %p203, %p204
      %p206 = scmp.le.s32.totalorder 1, %s21
      %p207 = scmp.lt.s32.totalorder %s21, 9
      %p208 = pnand %p206, %p207
      %p209 = pneg %p208
      // Predicated region
      $region9: #{tpu_custom_call.1} parent=5 // pred_check
        _
      $region10: #{tpu_custom_call.1} parent=5 // pred_check_branch
        %211 = sbr.rel (%p208) target = $region12
      $region11: #{tpu_custom_call.1} parent=5 // pred_region
        %s212 = ssub.s32 %s21, 1
        // Predicated region
        $region13: #{tpu_custom_call.1} parent=11 // pred_check
          %p213 = pneg %p149
        $region14: #{tpu_custom_call.1} parent=11 // pred_check_branch
          %215 = sbr.rel (%p213) target = $region16
        $region15: #{tpu_custom_call.1} parent=11 // pred_region
          _
        $region16: #{tpu_custom_call.1} parent=11 // pred_fallthru
          _
        // Predicated region
        $region17: #{tpu_custom_call.1} parent=11 // pred_check
          %p216 = pneg %p170
        $region18: #{tpu_custom_call.1} parent=11 // pred_check_branch
          %218 = sbr.rel (%p216) target = $region20
        $region19: #{tpu_custom_call.1} parent=11 // pred_region
          %s220 = ssub.s32 128, 128
          %221 = vsyncadd [#allocation10], %s220
          %s223 = sshll.u32 [#allocation9], 4
          %s224 = int_to_ptr.vmem [resolvable:$true] %s223
          %226 = dma.hbm_to_vmem [thread:$0]  %s4, 128, %s224, [#allocation10]
        $region20: #{tpu_custom_call.1} parent=11 // pred_fallthru
          _
      $region12: #{tpu_custom_call.1} parent=5 // pred_fallthru
        _
      %p227 = scmp.lt.s32.totalorder %s21, 8
      // Predicated region
      $region21: #{tpu_custom_call.1} parent=5 // pred_check
        %p228 = pneg %p227
      $region22: #{tpu_custom_call.1} parent=5 // pred_check_branch
        %230 = sbr.rel (%p228) target = $region24
      $region23: #{tpu_custom_call.1} parent=5 // pred_region
        // Predicated region
        $region25: #{tpu_custom_call.1} parent=23 // pred_check
          %p231 = pneg %p62
        $region26: #{tpu_custom_call.1} parent=23 // pred_check_branch
          %233 = sbr.rel (%p231) target = $region28
        $region27: #{tpu_custom_call.1} parent=23 // pred_region
          %s234 = sand.u32 %s52, 1
          %s235 = scalar_lea.sflag [#allocation4], %s234
          %s236 = sand.u32 %s52, 1
          %s237 = smul.addr %s236, 8
          %s238 = scalar_lea.vmem [#allocation3], %s237
          %s240 = ssub.s32 128, 128
          %241 = vsyncadd %s235, %s240
          %s242 = sadd.s32 %s29, %s28
          %s243 = smul.addr %s242, 128
          %s244 = scalar_lea.hbm %s0, %s243
          %s246 = sshll.u32 %s238, 4
          %s247 = int_to_ptr.vmem [resolvable:$true] %s246
          %249 = dma.hbm_to_vmem [thread:$0]  %s244, 128, %s247, %s235
        $region28: #{tpu_custom_call.1} parent=23 // pred_fallthru
          _
        // Predicated region
        $region29: #{tpu_custom_call.1} parent=23 // pred_check
          %p250 = pneg %p92
        $region30: #{tpu_custom_call.1} parent=23 // pred_check_branch
          %252 = sbr.rel (%p250) target = $region32
        $region31: #{tpu_custom_call.1} parent=23 // pred_region
          %s253 = sand.u32 %s21, 1
          %s254 = scalar_lea.sflag [#allocation7], %s253
          %s255 = sand.u32 %s82, 1
          %s256 = smul.addr %s255, 32
          %s257 = scalar_lea.vmem [#allocation6], %s256
          %s259 = ssub.s32 512, 512
          %260 = vsyncadd %s254, %s259
          %s261 = smul.addr %s28, 8
          %s262 = sadd.s32 %s29, %s261
          %s263 = smul.addr %s30, 16
          %s264 = sadd.s32 %s262, %s263
          %s265 = smul.addr %s264, 64
          %s266 = scalar_lea.hbm %s1, %s265
          %s267 = sshll.u32 %s257, 4
          %s268 = int_to_ptr.vmem [resolvable:$true] %s267
          %273 = dma.hbm_to_vmem [thread:$0]  %s266, 512, %s268, %s254, 64, 64, 4
        $region32: #{tpu_custom_call.1} parent=23 // pred_fallthru
          _
        // Predicated region
        $region33: #{tpu_custom_call.1} parent=23 // pred_check
          %p274 = pneg %p122
        $region34: #{tpu_custom_call.1} parent=23 // pred_check_branch
          %276 = sbr.rel (%p274) target = $region36
        $region35: #{tpu_custom_call.1} parent=23 // pred_region
          %s277 = sand.u32 %s21, 1
          %s278 = scalar_lea.sflag [#allocation7], %s277
          %s279 = sand.u32 %s112, 1
          %s280 = smul.addr %s279, 4
          %s281 = scalar_lea.vmem [#allocation8], %s280
          %s283 = ssub.s32 64, 64
          %284 = vsyncadd %s278, %s283
          %s285 = sadd.s32 %s29, %s28
          %s286 = smul.addr %s30, 2
          %s287 = sadd.s32 %s285, %s286
          %s288 = smul.addr %s287, 64
          %s289 = scalar_lea.hbm %s2, %s288
          %s291 = sshll.u32 %s281, 4
          %s292 = int_to_ptr.vmem [resolvable:$true] %s291
          %294 = dma.hbm_to_vmem [thread:$0]  %s289, 64, %s292, %s278
        $region36: #{tpu_custom_call.1} parent=23 // pred_fallthru
          _
      $region24: #{tpu_custom_call.1} parent=5 // pred_fallthru
        _
      %p295 = scmp.le.s32.totalorder 1, %s21
      %p296 = scmp.lt.s32.totalorder %s21, 9
      %p297 = pnand %p295, %p296
      %p298 = pneg %p297
      // Predicated region
      $region37: #{tpu_custom_call.1} parent=5 // pred_check
        _
      $region38: #{tpu_custom_call.1} parent=5 // pred_check_branch
        %300 = sbr.rel (%p297) target = $region40
      $region39: #{tpu_custom_call.1} parent=5 // pred_region
        %s301 = ssub.s32 %s21, 1
        %s302 = sand.u32 %s55, 1
        %s303 = scalar_lea.sflag [#allocation4], %s302
        %s304 = sand.u32 %s55, 1
        %s305 = smul.addr %s304, 8
        %s306 = scalar_lea.vmem [#allocation3], %s305
        // Predicated region
        $region41: #{tpu_custom_call.1} parent=39 // pred_check
          %p307 = pneg %p68
        $region42: #{tpu_custom_call.1} parent=39 // pred_check_branch
          %309 = sbr.rel (%p307) target = $region44
        $region43: #{tpu_custom_call.1} parent=39 // pred_region
          %310 = dma.done %s303, 128
        $region44: #{tpu_custom_call.1} parent=39 // pred_fallthru
          _
        %s311 = sand.u32 %s26, 1
        %s312 = scalar_lea.sflag [#allocation7], %s311
        %s313 = sand.u32 %s85, 1
        %s314 = smul.addr %s313, 32
        %s315 = scalar_lea.vmem [#allocation6], %s314
        // Predicated region
        $region45: #{tpu_custom_call.1} parent=39 // pred_check
          %p316 = pneg %p98
        $region46: #{tpu_custom_call.1} parent=39 // pred_check_branch
          %318 = sbr.rel (%p316) target = $region48
        $region47: #{tpu_custom_call.1} parent=39 // pred_region
          %319 = dma.done %s312, 512
        $region48: #{tpu_custom_call.1} parent=39 // pred_fallthru
          _
        %s320 = sand.u32 %s26, 1
        %s321 = scalar_lea.sflag [#allocation7], %s320
        %s322 = sand.u32 %s115, 1
        %s323 = smul.addr %s322, 4
        %s324 = scalar_lea.vmem [#allocation8], %s323
        // Predicated region
        $region49: #{tpu_custom_call.1} parent=39 // pred_check
          %p325 = pneg %p128
        $region50: #{tpu_custom_call.1} parent=39 // pred_check_branch
          %327 = sbr.rel (%p325) target = $region52
        $region51: #{tpu_custom_call.1} parent=39 // pred_region
          %328 = dma.done %s321, 64
        $region52: #{tpu_custom_call.1} parent=39 // pred_fallthru
          _
        // Predicated region
        $region53: #{tpu_custom_call.1} parent=39 // pred_check
          %p329 = pneg %p170
        $region54: #{tpu_custom_call.1} parent=39 // pred_check_branch
          %331 = sbr.rel (%p329) target = $region56
        $region55: #{tpu_custom_call.1} parent=39 // pred_region
          %332 = dma.done [#allocation10], 128
        $region56: #{tpu_custom_call.1} parent=39 // pred_fallthru
          _
        %s333 = sand.u32 %s55, 1
        %s334 = scalar_lea.sflag [#allocation4], %s333
        %s335 = sand.u32 %s55, 1
        %s336 = smul.addr %s335, 8
        %s337 = scalar_lea.vmem [#allocation3], %s336
        %p338 = pneg %p68
        %p339 = pneg %p65
        %s340 = sand.u32 %s26, 1
        %s341 = scalar_lea.sflag [#allocation7], %s340
        %s342 = sand.u32 %s85, 1
        %s343 = smul.addr %s342, 32
        %s344 = scalar_lea.vmem [#allocation6], %s343
        %p345 = pneg %p98
        %p346 = pneg %p95
        %s347 = sand.u32 %s26, 1
        %s348 = scalar_lea.sflag [#allocation7], %s347
        %s349 = sand.u32 %s115, 1
        %s350 = smul.addr %s349, 4
        %s351 = scalar_lea.vmem [#allocation8], %s350
        %p352 = pneg %p128
        %p353 = pneg %p125
        %p354 = pneg %p149
        %p355 = pneg %p146
        %p356 = pneg %p170
        %p357 = pneg %p167
        %p358 = pneg %p198
        %p359 = pneg %p195
        %s360 = sand.u32 %s185, 1
        %s361 = scalar_lea.sflag [#allocation5], %s360
        %s362 = sand.u32 %s185, 1
        %s363 = smul.addr %s362, 8
        %s364 = scalar_lea.vmem [#allocation11], %s363
        %p365 = scmp.eq.s32.totalorder %s33, 0
        // Predicated region
        $region57: #{tpu_custom_call.1} parent=39 // pred_check
          %p366 = pneg %p365
        $region58: #{tpu_custom_call.1} parent=39 // pred_check_branch
          %368 = sbr.rel (%p366) target = $region60
        $region59: #{tpu_custom_call.1} parent=39 // pred_region
          %vm369 = vcmask 523264
          %370 = vst.msk [vmem:[%s364] sm:$0xff] %vm369, 0.0
          %v371 = vld [vmem:[%s3] sm:$0xff]
          %v372 = vld [vmem:[%s306] sm:$0xff]
          %vm373 = vcmask 64512
          %v375 = vsel %vm373, %v371, 0
          %377 = vmatprep.subr.mxu0 0.0
          %378 = vmatpush1.msra.mxu0 %v372
          %379 = vmatprep.subr.mxu0 0.0
          %380 = vmatpush1.msra.mxu0 0.0
          %381 = vmatprep.subr.mxu0 0.0
          %382 = vmatpush1.msra.mxu0 0.0
          %383 = vmatprep.subr.mxu0 0.0
          %384 = vmatpush1.msra.mxu0 0.0
          %385 = vmatprep.subr.mxu0 0.0
          %386 = vmatpush1.msra.mxu0 0.0
          %387 = vmatprep.subr.mxu0 0.0
          %388 = vmatpush1.msra.mxu0 0.0
          %389 = vmatprep.subr.mxu0 0.0
          %390 = vmatpush1.msra.mxu0 0.0
          %391 = vmatprep.subr.mxu0 0.0
          %392 = vmatpush1.msra.mxu0 0.0
          %393 = vmatprep.subr.mxu0 0.0
          %394 = vmatpush1.msra.mxu0 0.0
          %395 = vmatprep.subr.mxu0 0.0
          %396 = vmatpush1.msra.mxu0 0.0
          %397 = vmatprep.subr.mxu0 0.0
          %398 = vmatpush1.msra.mxu0 0.0
          %399 = vmatprep.subr.mxu0 0.0
          %400 = vmatpush1.msra.mxu0 0.0
          %401 = vmatprep.subr.mxu0 0.0
          %402 = vmatpush1.msra.mxu0 0.0
          %403 = vmatprep.subr.mxu0 0.0
          %404 = vmatpush1.msra.mxu0 0.0
          %405 = vmatprep.subr.mxu0 0.0
          %406 = vmatpush1.msra.mxu0 0.0
          %407 = vmatprep.subr.mxu0 0.0
          %408 = vmatpush1.msra.mxu0 0.0
          %409 = vmatprep.subr.mxu0 0.0
          %410 = vmatpush1.msra.mxu0 0.0
          %411 = vmatprep.subr.mxu0 0.0
          %412 = vmatpush1.msra.mxu0 0.0
          %413 = vmatprep.subr.mxu0 0.0
          %414 = vmatpush1.msra.mxu0 0.0
          %415 = vmatprep.subr.mxu0 0.0
          %416 = vmatpush1.msra.mxu0 0.0
          %417 = vmatprep.subr.mxu0 0.0
          %418 = vmatpush1.msra.mxu0 0.0
          %419 = vmatprep.subr.mxu0 0.0
          %420 = vmatpush1.msra.mxu0 0.0
          %421 = vmatprep.subr.mxu0 0.0
          %422 = vmatpush1.msra.mxu0 0.0
          %423 = vmatprep.subr.mxu0 0.0
          %424 = vmatpush1.msra.mxu0 0.0
          %425 = vmatprep.subr.mxu0 0.0
          %426 = vmatpush1.msra.mxu0 0.0
          %427 = vmatprep.subr.mxu0 0.0
          %428 = vmatpush1.msra.mxu0 0.0
          %429 = vmatprep.subr.mxu0 0.0
          %430 = vmatpush1.msra.mxu0 0.0
          %431 = vmatprep.subr.mxu0 0.0
          %432 = vmatpush1.msra.mxu0 0.0
          %433 = vmatprep.subr.mxu0 0.0
          %434 = vmatpush1.msra.mxu0 0.0
          %435 = vmatprep.subr.mxu0 0.0
          %436 = vmatpush1.msra.mxu0 0.0
          %437 = vmatprep.subr.mxu0 0.0
          %438 = vmatpush1.msra.mxu0 0.0
          %439 = vmatprep.subr.mxu0 0.0
          %440 = vmatpush1.msra.mxu0 0.0
          %441 = vmatprep.mubr.f32.mxu0 0.0
          %442 = vmatmul.mubr.f32.gmra.mrb[0].mxu0 %v375
          %v443 = vpop.f32.mrb[0].mxu0
          %v444 = vadd.f32 0.0, %v443
          %v445 = vpop.f32.mrb[0].mxu0
          %446 = vdwg.mxu0
          %447 = vst.msk [vmem:[#allocation2] sm:$0xff] %vm369, %v444
        $region60: #{tpu_custom_call.1} parent=39 // pred_fallthru
          _
        %v448 = vld [vmem:[%s315] sm:$0xf]
        %v449 = vld [vmem:[%s315 + $0x4] sm:$0xf]
        %v450 = vld [vmem:[%s315 + $0x8] sm:$0xf]
        %v451 = vld [vmem:[%s315 + $0xc] sm:$0xf]
        %v452 = vld [vmem:[%s315 + $0x10] sm:$0xf]
        %v453 = vld [vmem:[%s315 + $0x14] sm:$0xf]
        %v454 = vld [vmem:[%s315 + $0x18] sm:$0xf]
        %v455 = vld [vmem:[%s315 + $0x1c] sm:$0xf]
        %v456 = vunpack.c.l.bf16 %v448
        %v457 = vunpack.c.l.bf16 %v449
        %v458 = vunpack.c.l.bf16 %v450
        %v459 = vunpack.c.l.bf16 %v451
        %v460 = vunpack.c.l.bf16 %v452
        %v461 = vunpack.c.l.bf16 %v453
        %v462 = vunpack.c.l.bf16 %v454
        %v463 = vunpack.c.l.bf16 %v455
        %v464 = vld [vmem:[%s324] sm:$0xf]
        %v465 = vunpack.c.l.bf16 %v464
        %v466 = vld [vmem:[#allocation2] sm:$0xff]
        %v467 = vmul.f32 %v466, %v456
        %v468 = vmul.f32 %v466, %v457
        %v469 = vmul.f32 %v466, %v458
        %v470 = vmul.f32 %v466, %v459
        %v471 = vmul.f32 %v466, %v460
        %v472 = vmul.f32 %v466, %v461
        %v473 = vmul.f32 %v466, %v462
        %v474 = vmul.f32 %v466, %v463
        %vm475 = vcmask 523264
        %v476 = vsel %vm475, %v467, 0.0
        %v477 = vrot.slane %v476, 4
        %v478 = vadd.f32 %v476, %v477
        %v479 = vrot.slane %v478, 2
        %v480 = vadd.f32 %v478, %v479
        %v481 = vrot.slane %v480, 1
        %v482 = vadd.f32 %v480, %v481
        %v483 = vsel %vm475, %v468, 0.0
        %v484 = vrot.slane %v483, 4
        %v485 = vadd.f32 %v483, %v484
        %v486 = vrot.slane %v485, 2
        %v487 = vadd.f32 %v485, %v486
        %v488 = vrot.slane %v487, 1
        %v489 = vadd.f32 %v487, %v488
        %v490 = vsel %vm475, %v469, 0.0
        %v491 = vrot.slane %v490, 4
        %v492 = vadd.f32 %v490, %v491
        %v493 = vrot.slane %v492, 2
        %v494 = vadd.f32 %v492, %v493
        %v495 = vrot.slane %v494, 1
        %v496 = vadd.f32 %v494, %v495
        %v497 = vsel %vm475, %v470, 0.0
        %v498 = vrot.slane %v497, 4
        %v499 = vadd.f32 %v497, %v498
        %v500 = vrot.slane %v499, 2
        %v501 = vadd.f32 %v499, %v500
        %v502 = vrot.slane %v501, 1
        %v503 = vadd.f32 %v501, %v502
        %v504 = vsel %vm475, %v471, 0.0
        %v505 = vrot.slane %v504, 4
        %v506 = vadd.f32 %v504, %v505
        %v507 = vrot.slane %v506, 2
        %v508 = vadd.f32 %v506, %v507
        %v509 = vrot.slane %v508, 1
        %v510 = vadd.f32 %v508, %v509
        %v511 = vsel %vm475, %v472, 0.0
        %v512 = vrot.slane %v511, 4
        %v513 = vadd.f32 %v511, %v512
        %v514 = vrot.slane %v513, 2
        %v515 = vadd.f32 %v513, %v514
        %v516 = vrot.slane %v515, 1
        %v517 = vadd.f32 %v515, %v516
        %v518 = vsel %vm475, %v473, 0.0
        %v519 = vrot.slane %v518, 4
        %v520 = vadd.f32 %v518, %v519
        %v521 = vrot.slane %v520, 2
        %v522 = vadd.f32 %v520, %v521
        %v523 = vrot.slane %v522, 1
        %v524 = vadd.f32 %v522, %v523
        %v525 = vsel %vm475, %v474, 0.0
        %v526 = vrot.slane %v525, 4
        %v527 = vadd.f32 %v525, %v526
        %v528 = vrot.slane %v527, 2
        %v529 = vadd.f32 %v527, %v528
        %v530 = vrot.slane %v529, 1
        %v531 = vadd.f32 %v529, %v530
        %v533 = vrot.slane %v465, 1
        %v534 = vrot.slane %v465, 2
        %v535 = vrot.slane %v465, 3
        %v536 = vrot.slane %v465, 4
        %v537 = vrot.slane %v465, 5
        %v538 = vrot.slane %v465, 6
        %v539 = vrot.slane %v465, 7
        %v548 = vadd.f32 %v482, %v465
        %v549 = vadd.f32 %v489, %v533
        %v550 = vadd.f32 %v496, %v534
        %v551 = vadd.f32 %v503, %v535
        %v552 = vadd.f32 %v510, %v536
        %v553 = vadd.f32 %v517, %v537
        %v554 = vadd.f32 %v524, %v538
        %v555 = vadd.f32 %v531, %v539
        %vm556 = vcmask 516096
        %v557 = vsel %vm556, %v548, -inf
        %v558 = vsel %vm556, %v549, -inf
        %v559 = vsel %vm556, %v550, -inf
        %v560 = vsel %vm556, %v551, -inf
        %v561 = vsel %vm556, %v552, -inf
        %v562 = vmax.f32 %v557, %v561
        %v563 = vsel %vm556, %v553, -inf
        %v564 = vmax.f32 %v558, %v563
        %v565 = vsel %vm556, %v554, -inf
        %v566 = vmax.f32 %v559, %v565
        %v567 = vsel %vm556, %v555, -inf
        %v568 = vmax.f32 %v560, %v567
        %v569 = vmax.f32 %v562, %v564
        %v570 = vmax.f32 %v566, %v568
        %v571 = vmax.f32 %v569, %v570
        %v572 = vlaneseq
        %v573 = vshrl.u32 %v572, 7
        %v574 = vsub.s32 0, %v573
        %v575 = vrot.slane %v571, %v574
        %v576 = vsub.f32 %v548, %v575
        %v577 = vsub.f32 %v549, %v575
        %v578 = vsub.f32 %v550, %v575
        %v579 = vsub.f32 %v551, %v575
        %v580 = vsub.f32 %v552, %v575
        %v581 = vsub.f32 %v553, %v575
        %v582 = vsub.f32 %v554, %v575
        %v583 = vsub.f32 %v555, %v575
        %v584 = vmul.f32 %v576, 1.442695
        %v585 = vpow.pop %v584
        %v586 = vmul.f32 %v577, 1.442695
        %v587 = vpow.pop %v586
        %v588 = vmul.f32 %v578, 1.442695
        %v589 = vpow.pop %v588
        %v590 = vmul.f32 %v579, 1.442695
        %v591 = vpow.pop %v590
        %v592 = vmul.f32 %v580, 1.442695
        %v593 = vpow.pop %v592
        %v594 = vmul.f32 %v581, 1.442695
        %v595 = vpow.pop %v594
        %v596 = vmul.f32 %v582, 1.442695
        %v597 = vpow.pop %v596
        %v598 = vmul.f32 %v583, 1.442695
        %v599 = vpow.pop %v598
        %v608 = vrot.slane %v587, 7
        %vm609 = vcmask 1041409
        %v610 = vsel %vm609, %v608, %v585
        %v611 = vrot.slane %v589, 6
        %vm612 = vcmask 1042434
        %v613 = vsel %vm612, %v611, %v610
        %v614 = vrot.slane %v591, 5
        %vm615 = vcmask 1043459
        %v616 = vsel %vm615, %v614, %v613
        %v617 = vrot.slane %v593, 4
        %vm618 = vcmask 1044484
        %v619 = vsel %vm618, %v617, %v616
        %v620 = vrot.slane %v595, 3
        %vm621 = vcmask 1045509
        %v622 = vsel %vm621, %v620, %v619
        %v623 = vrot.slane %v597, 2
        %vm624 = vcmask 1046534
        %v625 = vsel %vm624, %v623, %v622
        %v626 = vrot.slane %v599, 1
        %vm627 = vcmask 1047559
        %v628 = vsel %vm627, %v626, %v625
        %v630 = vsel %vm475, %v628, 0.0
        %v631 = vrot.slane %v630, 4
        %v632 = vadd.f32 %v630, %v631
        %v633 = vrot.slane %v632, 2
        %v634 = vadd.f32 %v632, %v633
        %v635 = vrot.slane %v634, 1
        %v636 = vadd.f32 %v634, %v635
        %v637 = vrcp.pop %v636
        %v638 = vlaneseq
        %v639 = vshrl.u32 %v638, 7
        %v640 = vsub.s32 0, %v639
        %v641 = vrot.slane %v637, %v640
        %v642 = vmul.f32 %v585, %v641
        %v643 = vmul.f32 %v587, %v641
        %v644 = vmul.f32 %v589, %v641
        %v645 = vmul.f32 %v591, %v641
        %v646 = vmul.f32 %v593, %v641
        %v647 = vmul.f32 %v595, %v641
        %v648 = vmul.f32 %v597, %v641
        %v649 = vmul.f32 %v599, %v641
        %v650 = vlaneseq
        %v651 = vshrl.u32 %v650, 7
        %v652 = vsub.s32 0, %v651
        %v653 = vrot.slane %v642, %v652
        %v654 = vlaneseq
        %v655 = vshrl.u32 %v654, 7
        %v656 = vsub.s32 0, %v655
        %v657 = vrot.slane %v643, %v656
        %v658 = vlaneseq
        %v659 = vshrl.u32 %v658, 7
        %v660 = vsub.s32 0, %v659
        %v661 = vrot.slane %v644, %v660
        %v662 = vlaneseq
        %v663 = vshrl.u32 %v662, 7
        %v664 = vsub.s32 0, %v663
        %v665 = vrot.slane %v645, %v664
        %v666 = vlaneseq
        %v667 = vshrl.u32 %v666, 7
        %v668 = vsub.s32 0, %v667
        %v669 = vrot.slane %v646, %v668
        %v670 = vlaneseq
        %v671 = vshrl.u32 %v670, 7
        %v672 = vsub.s32 0, %v671
        %v673 = vrot.slane %v647, %v672
        %v674 = vlaneseq
        %v675 = vshrl.u32 %v674, 7
        %v676 = vsub.s32 0, %v675
        %v677 = vrot.slane %v648, %v676
        %v678 = vlaneseq
        %v679 = vshrl.u32 %v678, 7
        %v680 = vsub.s32 0, %v679
        %v681 = vrot.slane %v649, %v680
        %v682 = vmul.f32 %v653, %v456
        %v683 = vmul.f32 %v657, %v457
        %v684 = vmul.f32 %v661, %v458
        %v685 = vmul.f32 %v665, %v459
        %v686 = vmul.f32 %v669, %v460
        %v687 = vmul.f32 %v673, %v461
        %v688 = vmul.f32 %v677, %v462
        %v689 = vmul.f32 %v681, %v463
        %v690 = vsel %vm475, %v682, 0.0
        %v691 = vsel %vm475, %v683, 0.0
        %v692 = vadd.f32 %v690, %v691
        %v693 = vsel %vm475, %v684, 0.0
        %v694 = vadd.f32 %v692, %v693
        %v695 = vsel %vm475, %v685, 0.0
        %v696 = vadd.f32 %v694, %v695
        %v697 = vsel %vm475, %v686, 0.0
        %v698 = vadd.f32 %v696, %v697
        %v699 = vsel %vm475, %v687, 0.0
        %v700 = vadd.f32 %v698, %v699
        %v701 = vsel %vm475, %v688, 0.0
        %v702 = vadd.f32 %v700, %v701
        %v703 = vsel %vm475, %v689, 0.0
        %v704 = vadd.f32 %v702, %v703
        %v705 = vld [vmem:[%s364] sm:$0xff]
        %v706 = vld [vmem:[#allocation9] sm:$0xff]
        %vm707 = vcmask 64512
        %v709 = vsel %vm707, %v706, 0
        %711 = vmatprep.subr.mxu0 0.0
        %712 = vmatpush1.msra.mxu0 %v704
        %713 = vmatprep.subr.mxu0 0.0
        %714 = vmatpush1.msra.mxu0 0.0
        %715 = vmatprep.subr.mxu0 0.0
        %716 = vmatpush1.msra.mxu0 0.0
        %717 = vmatprep.subr.mxu0 0.0
        %718 = vmatpush1.msra.mxu0 0.0
        %719 = vmatprep.subr.mxu0 0.0
        %720 = vmatpush1.msra.mxu0 0.0
        %721 = vmatprep.subr.mxu0 0.0
        %722 = vmatpush1.msra.mxu0 0.0
        %723 = vmatprep.subr.mxu0 0.0
        %724 = vmatpush1.msra.mxu0 0.0
        %725 = vmatprep.subr.mxu0 0.0
        %726 = vmatpush1.msra.mxu0 0.0
        %727 = vmatprep.subr.mxu0 0.0
        %728 = vmatpush1.msra.mxu0 0.0
        %729 = vmatprep.subr.mxu0 0.0
        %730 = vmatpush1.msra.mxu0 0.0
        %731 = vmatprep.subr.mxu0 0.0
        %732 = vmatpush1.msra.mxu0 0.0
        %733 = vmatprep.subr.mxu0 0.0
        %734 = vmatpush1.msra.mxu0 0.0
        %735 = vmatprep.subr.mxu0 0.0
        %736 = vmatpush1.msra.mxu0 0.0
        %737 = vmatprep.subr.mxu0 0.0
        %738 = vmatpush1.msra.mxu0 0.0
        %739 = vmatprep.subr.mxu0 0.0
        %740 = vmatpush1.msra.mxu0 0.0
        %741 = vmatprep.subr.mxu0 0.0
        %742 = vmatpush1.msra.mxu0 0.0
        %743 = vmatprep.subr.mxu0 0.0
        %744 = vmatpush1.msra.mxu0 0.0
        %745 = vmatprep.subr.mxu0 0.0
        %746 = vmatpush1.msra.mxu0 0.0
        %747 = vmatprep.subr.mxu0 0.0
        %748 = vmatpush1.msra.mxu0 0.0
        %749 = vmatprep.subr.mxu0 0.0
        %750 = vmatpush1.msra.mxu0 0.0
        %751 = vmatprep.subr.mxu0 0.0
        %752 = vmatpush1.msra.mxu0 0.0
        %753 = vmatprep.subr.mxu0 0.0
        %754 = vmatpush1.msra.mxu0 0.0
        %755 = vmatprep.subr.mxu0 0.0
        %756 = vmatpush1.msra.mxu0 0.0
        %757 = vmatprep.subr.mxu0 0.0
        %758 = vmatpush1.msra.mxu0 0.0
        %759 = vmatprep.subr.mxu0 0.0
        %760 = vmatpush1.msra.mxu0 0.0
        %761 = vmatprep.subr.mxu0 0.0
        %762 = vmatpush1.msra.mxu0 0.0
        %763 = vmatprep.subr.mxu0 0.0
        %764 = vmatpush1.msra.mxu0 0.0
        %765 = vmatprep.subr.mxu0 0.0
        %766 = vmatpush1.msra.mxu0 0.0
        %767 = vmatprep.subr.mxu0 0.0
        %768 = vmatpush1.msra.mxu0 0.0
        %769 = vmatprep.subr.mxu0 0.0
        %770 = vmatpush1.msra.mxu0 0.0
        %771 = vmatprep.subr.mxu0 0.0
        %772 = vmatpush1.msra.mxu0 0.0
        %773 = vmatprep.subr.mxu0 0.0
        %774 = vmatpush1.msra.mxu0 0.0
        %775 = vmatprep.mubr.f32.mxu0 0.0
        %776 = vmatmul.mubr.f32.gmra.mrb[0].mxu0 %v709
        %v777 = vpop.f32.mrb[0].mxu0
        %v778 = vadd.f32 0.0, %v777
        %v779 = vpop.f32.mrb[0].mxu0
        %780 = vdwg.mxu0
        %v781 = vadd.f32 %v705, %v778
        %782 = vst.msk [vmem:[%s364] sm:$0xff] %vm475, %v781
        %s783 = sand.u32 %s185, 1
        %s784 = scalar_lea.sflag [#allocation5], %s783
        %s785 = sand.u32 %s185, 1
        %s786 = smul.addr %s785, 8
        %s787 = scalar_lea.vmem [#allocation11], %s786
        // Predicated region
        $region61: #{tpu_custom_call.1} parent=39 // pred_check
          %p788 = pneg %p195
        $region62: #{tpu_custom_call.1} parent=39 // pred_check_branch
          %790 = sbr.rel (%p788) target = $region64
        $region63: #{tpu_custom_call.1} parent=39 // pred_region
          %s792 = ssub.s32 128, 128
          %793 = vsyncadd %s784, %s792
          %s794 = sadd.s32 %s32, %s31
          %s795 = smul.addr %s794, 128
          %s796 = scalar_lea.hbm %s5, %s795
          %s798 = sshll.u32 %s787, 4
          %s799 = int_to_ptr.vmem [resolvable:$true] %s798
          %801 = dma.vmem_to_hbm [thread:$0]  %s799, 128, %s796, %s784
        $region64: #{tpu_custom_call.1} parent=39 // pred_fallthru
          _
      $region40: #{tpu_custom_call.1} parent=5 // pred_fallthru
        _
      %p802 = scmp.le.s32.totalorder 2, %s21
      // Predicated region
      $region65: #{tpu_custom_call.1} parent=5 // pred_check
        %p803 = pneg %p802
      $region66: #{tpu_custom_call.1} parent=5 // pred_check_branch
        %805 = sbr.rel (%p803) target = $region68
      $region67: #{tpu_custom_call.1} parent=5 // pred_region
        %s806 = ssub.s32 %s21, 2
        // Predicated region
        $region69: #{tpu_custom_call.1} parent=67 // pred_check
          %p807 = pneg %p201
        $region70: #{tpu_custom_call.1} parent=67 // pred_check_branch
          %809 = sbr.rel (%p807) target = $region72
        $region71: #{tpu_custom_call.1} parent=67 // pred_region
          %s810 = sand.u32 %s186, 1
          %s811 = scalar_lea.sflag [#allocation5], %s810
          %s812 = sand.u32 %s186, 1
          %s813 = smul.addr %s812, 8
          %s814 = scalar_lea.vmem [#allocation11], %s813
          %815 = dma.done %s811, 128
        $region72: #{tpu_custom_call.1} parent=67 // pred_fallthru
          _
      $region68: #{tpu_custom_call.1} parent=5 // pred_fallthru
        _
    $region6: #{tpu_custom_call.1} parent=1 // loop_footer
      %s25 = sadd.s32 1, %s21
    $region7: #{tpu_custom_call.1} parent=1 // loop_footer_branch
      %20 = sbr.rel target = $region3
    $region8: #{tpu_custom_call.1} parent=1 // loop_exit
      _
    %816 = vsyncpa [#allocation4], 1
    %s817 = scalar_lea.sflag [#allocation4], 1
    %818 = vsyncpa %s817, 1
    %819 = vsyncpa [#allocation7], 1
    %s820 = scalar_lea.sflag [#allocation7], 1
    %821 = vsyncpa %s820, 1
    %822 = vsyncpa [#allocation10], 1
    %823 = vsyncpa [#allocation5], 1
    %s824 = scalar_lea.sflag [#allocation5], 1
    %825 = vsyncpa %s824, 1

</llo_original>
